<compile_context>
chip_gen: v7x
topology: tpu7x:2x2x1
jax: 0.10.0
libtpu: 0.0.40
codegen_flags: <defaults>
</compile_context>

<pallas_src>
import functools

import jax
import jax.numpy as jnp
import numpy as np
from jax.experimental import pallas as pl
from jax.experimental.pallas import tpu as pltpu

SMALL = 1e-6                         # matches self.small in the PyTorch module


def _voxel_loss_kernel(p_ref, pos_ref, neg_ref, rm_ref, tgt_ref, g_ref,
                       clsp_ref, clsn_ref, psum_ref, nsum_ref, sl1_ref,
                       *, rows_total, tm, nsteps, use_row_mask):
    c = pl.program_id(0)             # "parallel" axis (TensorCore split on v7x)
    j = pl.program_id(1)             # "arbitrary" reduction axis

    @pl.when(j == 0)
    def _init():
        clsp_ref[...] = jnp.zeros_like(clsp_ref)
        clsn_ref[...] = jnp.zeros_like(clsn_ref)
        psum_ref[...] = jnp.zeros_like(psum_ref)
        nsum_ref[...] = jnp.zeros_like(nsum_ref)
        sl1_ref[...] = jnp.zeros_like(sl1_ref)

    f32 = jnp.float32
    pos = pos_ref[...].astype(f32)   # bf16 0/1 stream -> f32 (exact)
    neg = neg_ref[...].astype(f32)

    if use_row_mask:
        # Tail tile: rows >= rows_total were read out of bounds (unspecified
        # values) -- select them to exactly zero before any accumulation.
        row0 = (c * nsteps + j) * tm
        rows = jax.lax.broadcasted_iota(jnp.int32, (tm, 1), 0) + row0
        valid = rows < rows_total
        mask = lambda v: jnp.where(valid, v, 0.0)
    else:
        mask = lambda v: v

    # ---- classification branch ------------------------------------------
    x = jnp.clip(p_ref[...], -30.0, 30.0)          # keep exp(-x) finite
    den = 1.0 + jnp.exp(-x)
    r = pl.reciprocal(den, approx=True)            # EUP vrcp
    p = r * (2.0 - den * r)                        # one VPU Newton step -> f32 sigmoid
    cls_pos = mask(-pos * jnp.log(p + SMALL))
    cls_neg = mask(-neg * jnp.log(1.0 - p + SMALL))

    # ---- regression branch (SmoothL1, reduction='sum', beta=1) ----------
    # smoothl1(rm*m, tgt*m) == m*smoothl1(rm - tgt) for a 0/1 mask, so the old
    # materialized mask stream is eliminated: compute smooth-L1 unmasked,
    # group-sum the 7 box channels with one 0/1 MXU matmul and apply the
    # (TM, Lc) pos tile afterwards.
    d = rm_ref[...] - tgt_ref[...]
    t = jnp.abs(d)
    sl1 = jnp.where(t < 1.0, 0.5 * t * t, t - 0.5)
    grouped = jnp.dot(sl1, g_ref[...].astype(f32),
                      preferred_element_type=f32)   # (TM, Lc)
    sl1_pos = mask(grouped * pos)

    # ---- partial accumulation: keep 8 sublanes, pure VPU adds -------------
    # (cross-lane and cross-core reductions are deferred to the wrapper)
    def acc8(v):
        return jnp.sum(v.reshape(tm // 8, 8, v.shape[-1]), axis=0)

    clsp_ref[...] += acc8(cls_pos)
    clsn_ref[...] += acc8(cls_neg)
    psum_ref[...] += acc8(mask(pos))
    nsum_ref[...] += acc8(mask(neg))
    sl1_ref[...] += acc8(sl1_pos)


def _tpu_vmem_capacity_bytes():
    try:
        return int(getattr(pltpu.get_tpu_info(), "vmem_capacity_bytes",
                           64 * 1024 * 1024))
    except Exception:
        return 64 * 1024 * 1024


def _num_tensorcores():
    # 2 TensorCores per chip only on v7x; on single-core v5e/v6e a size-2
    # "parallel" axis would just serialize and shrink the per-core tiles.
    try:
        kind = jax.devices()[0].device_kind.lower()
    except Exception:
        return 1
    return 2 if ("v7" in kind or "7x" in kind) else 1


def _choose_tiling(rows_per_core, tm_cap):
    """Largest TM (multiple of 16 for bf16 sublane packing) under the VMEM cap,
    preferring an exact divisor of rows_per_core so no tail masking is needed."""
    tm_cap = max(16, (tm_cap // 16) * 16)
    tm = min(tm_cap, ((rows_per_core + 15) // 16) * 16)
    if rows_per_core % tm:
        for cand in range(tm, max(15, tm - 16 * 8), -16):
            if rows_per_core % cand == 0:
                tm = cand
                break
    nsteps = -(-rows_per_core // tm)
    return tm, nsteps


@functools.partial(jax.jit, static_argnames=("alpha", "beta", "reg"))
def voxel_loss(rm, psm, pos_equal_one, neg_equal_one, targets,
               alpha=1.5, beta=1.0, reg=2.0):
    """rm: (N, A*7, H, W), psm: (N, A, H, W), pos/neg: (N, H, W, A),
    targets: (N, H, W, A*7).  Returns (conf_loss, reg_loss) scalars."""
    N, A, H, W = psm.shape
    C = rm.shape[1]                  # A * 7
    assert C == A * 7
    Lc = W * A                       # cls lane width, order (w, a)
    Lr = W * C                       # reg lane width, order (w, a, k)
    R = N * H                        # rows
    f32, bf16 = jnp.float32, jnp.bfloat16

    # NCHW -> NHWC for the two conv maps; pos/neg/targets are already NHWC so
    # their reshapes are free.  pos/neg are exact 0/1 -> ship them as bf16.
    p_logits = jnp.transpose(psm, (0, 2, 3, 1)).reshape(R, Lc).astype(f32)
    # TODO(synk): feed rm in native NCHW (4-D BlockSpec + in-kernel XLU
    # re-layout) to kill this HBM round trip; the C=A*7-minor transpose does
    # not lower robustly today and the bf16-before-transpose fallback changes
    # the module's f32 numerics, so rm keeps the f32 wrapper transpose.
    rm2 = jnp.transpose(rm, (0, 2, 3, 1)).reshape(R, Lr).astype(f32)
    pos2 = pos_equal_one.reshape(R, Lc).astype(bf16)
    neg2 = neg_equal_one.reshape(R, Lc).astype(bf16)
    tgt2 = targets.reshape(R, Lr).astype(f32)

    # 0/1 grouping matrix G[(w*A+a)*7 + k, w*A + a] = 1: one bf16 (exact for
    # 0/1) MXU matmul per tile group-sums the 7 box channels, replacing the
    # old materialized Lr-wide regression-mask stream.
    gmat = jnp.asarray(np.kron(np.eye(Lc, dtype=np.float32),
                               np.ones((7, 1), np.float32)), dtype=bf16)

    # --- generation-aware core split and tiling ---------------------------
    NCORES = _num_tensorcores()
    if NCORES > 1 and R < 64:
        NCORES = 1
    vmem_cap = _tpu_vmem_capacity_bytes()           # 64 MiB v7x, 128 MiB v5e/v6e
    stream_budget = int(vmem_cap * 0.40)            # input working set target
    vmem_limit = min(int(vmem_cap * 0.70), 100 * 1024 * 1024)
    # double-buffered streams (f32 logits/rm/tgt, bf16 pos/neg) + in-kernel
    # f32 temporaries (d / t / sl1) per row:
    bytes_per_row = 2 * (4 * Lc + 2 * Lc + 2 * Lc + 4 * Lr + 4 * Lr) + 3 * 4 * Lr
    fixed = 2 * (Lr * Lc * 2) + 5 * 2 * 8 * Lc * 4  # gmat + accumulator blocks
    tm_cap = max(16, (stream_budget - fixed) // max(bytes_per_row, 1))
    rows_per_core = -(-R // NCORES)
    TM, NSTEPS = _choose_tiling(rows_per_core, tm_cap)
    needs_mask = (NCORES * NSTEPS * TM) != R

    if needs_mask:
        # Clamp the block index so even a fully out-of-range tail tile issues
        # an in-bounds DMA; its rows are zeroed by the in-kernel row mask.
        # No whole-stream jnp.pad copy in HBM anymore.
        last_block = max(pl.cdiv(R, TM) - 1, 0)
        row_map = lambda c, j: (jnp.minimum(c * NSTEPS + j, last_block), 0)
    else:
        row_map = lambda c, j: (c * NSTEPS + j, 0)

    cls_spec = pl.BlockSpec((TM, Lc), row_map)
    reg_spec = pl.BlockSpec((TM, Lr), row_map)
    g_spec = pl.BlockSpec((Lr, Lc), lambda c, j: (0, 0))    # resident, DMA'd once
    out_spec = pl.BlockSpec((8, Lc), lambda c, j: (c, 0))   # VMEM-resident over j

    cost = pl.CostEstimate(
        flops=int(R * (4 * Lr + 12 * Lc) + 2 * R * Lr * Lc),
        transcendentals=int(3 * R * Lc),
        bytes_accessed=int(R * Lc * 4 + 2 * R * Lc * 2 + 2 * R * Lr * 4
                           + Lr * Lc * 2 + 5 * NCORES * 8 * Lc * 4))

    kernel = functools.partial(_voxel_loss_kernel, rows_total=R, tm=TM,
                               nsteps=NSTEPS, use_row_mask=needs_mask)

    parts = pl.pallas_call(
        kernel,
        out_shape=tuple(jax.ShapeDtypeStruct((NCORES * 8, Lc), f32)
                        for _ in range(5)),
        grid_spec=pltpu.PrefetchScalarGridSpec(
            num_scalar_prefetch=0,
            grid=(NCORES, NSTEPS),
            in_specs=[cls_spec, cls_spec, cls_spec, reg_spec, reg_spec, g_spec],
            out_specs=tuple(out_spec for _ in range(5))),
        compiler_params=pltpu.CompilerParams(
            dimension_semantics=("parallel", "arbitrary"),
            vmem_limit_bytes=vmem_limit),
        cost_estimate=cost,
    )(p_logits, pos2, neg2, rm2, tgt2, gmat)

    # Tiny final reductions + scalar glue.
    cls_pos_sum = jnp.sum(parts[0])
    cls_neg_sum = jnp.sum(parts[1])
    pos_sum = jnp.sum(parts[2])
    neg_sum = jnp.sum(parts[3])
    sl1_sum = jnp.sum(parts[4])

    conf_loss = (alpha * cls_pos_sum / (pos_sum + SMALL)
                 + beta * cls_neg_sum / (neg_sum + SMALL))
    reg_loss = reg * sl1_sum / (pos_sum + SMALL)
    return conf_loss, reg_loss


def voxel_loss_ref(rm, psm, pos, neg, targets, alpha, beta, reg):
    """Pure-JAX reference mirroring the PyTorch forward."""
    N, A, H, W = psm.shape
    p_pos = jax.nn.sigmoid(jnp.transpose(psm, (0, 2, 3, 1)))
    pos_reg = jnp.broadcast_to(pos[..., None], (N, H, W, A, 7))
    rm_ = jnp.transpose(rm, (0, 2, 3, 1)).reshape(N, H, W, A, 7)
    tg_ = targets.reshape(N, H, W, A, 7)
    t = jnp.abs(rm_ * pos_reg - tg_ * pos_reg)
    sl1 = jnp.sum(jnp.where(t < 1.0, 0.5 * t * t, t - 0.5))
    reg_loss = reg * sl1 / (jnp.sum(pos) + SMALL)
    cls_pos = jnp.sum(-pos * jnp.log(p_pos + SMALL)) / (jnp.sum(pos) + SMALL)
    cls_neg = jnp.sum(-neg * jnp.log(1.0 - p_pos + SMALL)) / (jnp.sum(neg) + SMALL)
    conf_loss = alpha * cls_pos + beta * cls_neg
    return conf_loss, reg_loss


if __name__ == "__main__":
    # Small VoxelNet-like shapes: batch=2, anchors=2, H=W=16.
    N, A, H, W = 2, 2, 16, 16
    alpha, beta, reg = 1.5, 1.0, 2.0

    key = jax.random.PRNGKey(0)
    k1, k2, k3, k4 = jax.random.split(key, 4)
    psm = jax.random.normal(k1, (N, A, H, W), dtype=jnp.float32)
    rm = jax.random.normal(k2, (N, A * 7, H, W), dtype=jnp.float32)
    targets = jax.random.normal(k3, (N, H, W, A * 7), dtype=jnp.float32)
    pos_equal_one = jax.random.bernoulli(k4, 0.1, (N, H, W, A)).astype(jnp.float32)
    neg_equal_one = 1.0 - pos_equal_one

    conf_loss, reg_loss = voxel_loss(rm, psm, pos_equal_one, neg_equal_one,
                                     targets, alpha=alpha, beta=beta, reg=reg)
    conf_loss = jax.block_until_ready(conf_loss)
    reg_loss = jax.block_until_ready(reg_loss)

    conf_ref, reg_ref = voxel_loss_ref(rm, psm, pos_equal_one, neg_equal_one,
                                       targets, alpha, beta, reg)
    np.testing.assert_allclose(np.asarray(conf_loss), np.asarray(conf_ref),
                               rtol=1e-3, atol=1e-4)
    np.testing.assert_allclose(np.asarray(reg_loss), np.asarray(reg_ref),
                               rtol=1e-3, atol=1e-4)
    print("KERNEL_OK")
</pallas_src>

<mosaic_0001>
module attributes {stable_mosaic.version = 11 : i64} {
  func.func @_voxel_loss_kernel(%arg0: i32, %arg1: i32, %arg2: memref<32x32xf32, #tpu.memory_space<vmem>>, %arg3: memref<32x32xbf16, #tpu.memory_space<vmem>>, %arg4: memref<32x32xbf16, #tpu.memory_space<vmem>>, %arg5: memref<32x224xf32, #tpu.memory_space<vmem>>, %arg6: memref<32x224xf32, #tpu.memory_space<vmem>>, %arg7: memref<224x32xbf16, #tpu.memory_space<vmem>>, %arg8: memref<8x32xf32, #tpu.memory_space<vmem>>, %arg9: memref<8x32xf32, #tpu.memory_space<vmem>>, %arg10: memref<8x32xf32, #tpu.memory_space<vmem>>, %arg11: memref<8x32xf32, #tpu.memory_space<vmem>>, %arg12: memref<8x32xf32, #tpu.memory_space<vmem>>) attributes {dimension_semantics = [#tpu.dimension_semantics<parallel>, #tpu.dimension_semantics<arbitrary>], iteration_bounds = array<i64: 1, 1>, scalar_prefetch = 0 : i64, scratch_operands = 0 : i64, tpu.core_type = #tpu.core_type<tc>, window_params = [{transform_indices = @transform_0, window_bounds = array<i64: 32, 32>}, {transform_indices = @transform_1, window_bounds = array<i64: 32, 32>}, {transform_indices = @transform_2, window_bounds = array<i64: 32, 32>}, {transform_indices = @transform_3, window_bounds = array<i64: 32, 224>}, {transform_indices = @transform_4, window_bounds = array<i64: 32, 224>}, {pipeline_mode = #tpu.pipeline_mode<synchronous>, transform_indices = @transform_5, window_bounds = array<i64: 224, 32>}, {transform_indices = @transform_6, window_bounds = array<i64: 8, 32>}, {transform_indices = @transform_7, window_bounds = array<i64: 8, 32>}, {transform_indices = @transform_8, window_bounds = array<i64: 8, 32>}, {transform_indices = @transform_9, window_bounds = array<i64: 8, 32>}, {transform_indices = @transform_10, window_bounds = array<i64: 8, 32>}]} {
    %c0_i32 = arith.constant 0 : i32
    %0 = arith.cmpi eq, %arg1, %c0_i32 : i32
    %1 = arith.extui %0 : i1 to i32
    %c0_i32_0 = arith.constant 0 : i32
    %2 = arith.cmpi ne, %1, %c0_i32_0 : i32
    scf.if %2 {
      %cst_50 = arith.constant 0.000000e+00 : f32
      %77 = vector.broadcast %cst_50 : f32 to vector<8x32xf32>
      %c0_51 = arith.constant 0 : index
      %c0_52 = arith.constant 0 : index
      %78 = vector.load %arg8[%c0_51, %c0_52] : memref<8x32xf32, #tpu.memory_space<vmem>>, vector<8x32xf32>
      tpu.vector_store %arg8[%c0_51, %c0_52], %77 {strides = array<i32>} : memref<8x32xf32, #tpu.memory_space<vmem>>, vector<8x32xf32>,
      %cst_53 = arith.constant 0.000000e+00 : f32
      %79 = vector.broadcast %cst_53 : f32 to vector<8x32xf32>
      %c0_54 = arith.constant 0 : index
      %c0_55 = arith.constant 0 : index
      %80 = vector.load %arg9[%c0_54, %c0_55] : memref<8x32xf32, #tpu.memory_space<vmem>>, vector<8x32xf32>
      tpu.vector_store %arg9[%c0_54, %c0_55], %79 {strides = array<i32>} : memref<8x32xf32, #tpu.memory_space<vmem>>, vector<8x32xf32>,
      %cst_56 = arith.constant 0.000000e+00 : f32
      %81 = vector.broadcast %cst_56 : f32 to vector<8x32xf32>
      %c0_57 = arith.constant 0 : index
      %c0_58 = arith.constant 0 : index
      %82 = vector.load %arg10[%c0_57, %c0_58] : memref<8x32xf32, #tpu.memory_space<vmem>>, vector<8x32xf32>
      tpu.vector_store %arg10[%c0_57, %c0_58], %81 {strides = array<i32>} : memref<8x32xf32, #tpu.memory_space<vmem>>, vector<8x32xf32>,
      %cst_59 = arith.constant 0.000000e+00 : f32
      %83 = vector.broadcast %cst_59 : f32 to vector<8x32xf32>
      %c0_60 = arith.constant 0 : index
      %c0_61 = arith.constant 0 : index
      %84 = vector.load %arg11[%c0_60, %c0_61] : memref<8x32xf32, #tpu.memory_space<vmem>>, vector<8x32xf32>
      tpu.vector_store %arg11[%c0_60, %c0_61], %83 {strides = array<i32>} : memref<8x32xf32, #tpu.memory_space<vmem>>, vector<8x32xf32>,
      %cst_62 = arith.constant 0.000000e+00 : f32
      %85 = vector.broadcast %cst_62 : f32 to vector<8x32xf32>
      %c0_63 = arith.constant 0 : index
      %c0_64 = arith.constant 0 : index
      %86 = vector.load %arg12[%c0_63, %c0_64] : memref<8x32xf32, #tpu.memory_space<vmem>>, vector<8x32xf32>
      tpu.vector_store %arg12[%c0_63, %c0_64], %85 {strides = array<i32>} : memref<8x32xf32, #tpu.memory_space<vmem>>, vector<8x32xf32>,
    } else {
    }
    %c0 = arith.constant 0 : index
    %c0_1 = arith.constant 0 : index
    %3 = vector.load %arg3[%c0, %c0_1] : memref<32x32xbf16, #tpu.memory_space<vmem>>, vector<32x32xbf16>
    %4 = arith.extf %3 : vector<32x32xbf16> to vector<32x32xf32>
    %c0_2 = arith.constant 0 : index
    %c0_3 = arith.constant 0 : index
    %5 = vector.load %arg4[%c0_2, %c0_3] : memref<32x32xbf16, #tpu.memory_space<vmem>>, vector<32x32xbf16>
    %6 = arith.extf %5 : vector<32x32xbf16> to vector<32x32xf32>
    %c0_4 = arith.constant 0 : index
    %c0_5 = arith.constant 0 : index
    %7 = vector.load %arg2[%c0_4, %c0_5] : memref<32x32xf32, #tpu.memory_space<vmem>>, vector<32x32xf32>
    %cst = arith.constant -3.000000e+01 : f32
    %cst_6 = arith.constant 3.000000e+01 : f32
    %8 = vector.broadcast %cst : f32 to vector<32x32xf32>
    %9 = arith.maximumf %8, %7 : vector<32x32xf32>
    %10 = vector.broadcast %cst_6 : f32 to vector<32x32xf32>
    %11 = arith.minimumf %10, %9 : vector<32x32xf32>
    %cst_7 = arith.constant 0.000000e+00 : f32
    %12 = vector.broadcast %cst_7 : f32 to vector<32x32xf32>
    %13 = arith.subf %12, %11 : vector<32x32xf32>
    %14 = math.exp %13 : vector<32x32xf32>
    %cst_8 = arith.constant 1.000000e+00 : f32
    %15 = vector.broadcast %cst_8 : f32 to vector<32x32xf32>
    %16 = arith.addf %15, %14 : vector<32x32xf32>
    %17 = tpu.reciprocal %16 {approx = true} : vector<32x32xf32> -> vector<32x32xf32>
    %18 = arith.mulf %16, %17 : vector<32x32xf32>
    %cst_9 = arith.constant 2.000000e+00 : f32
    %19 = vector.broadcast %cst_9 : f32 to vector<32x32xf32>
    %20 = arith.subf %19, %18 : vector<32x32xf32>
    %21 = arith.mulf %17, %20 : vector<32x32xf32>
    %cst_10 = arith.constant 0.000000e+00 : f32
    %22 = vector.broadcast %cst_10 : f32 to vector<32x32xf32>
    %23 = arith.subf %22, %4 : vector<32x32xf32>
    %cst_11 = arith.constant 9.99999997E-7 : f32
    %24 = vector.broadcast %cst_11 : f32 to vector<32x32xf32>
    %25 = arith.addf %21, %24 : vector<32x32xf32>
    %26 = math.log %25 : vector<32x32xf32>
    %27 = arith.mulf %23, %26 : vector<32x32xf32>
    %cst_12 = arith.constant 0.000000e+00 : f32
    %28 = vector.broadcast %cst_12 : f32 to vector<32x32xf32>
    %29 = arith.subf %28, %6 : vector<32x32xf32>
    %cst_13 = arith.constant 1.000000e+00 : f32
    %30 = vector.broadcast %cst_13 : f32 to vector<32x32xf32>
    %31 = arith.subf %30, %21 : vector<32x32xf32>
    %cst_14 = arith.constant 9.99999997E-7 : f32
    %32 = vector.broadcast %cst_14 : f32 to vector<32x32xf32>
    %33 = arith.addf %31, %32 : vector<32x32xf32>
    %34 = math.log %33 : vector<32x32xf32>
    %35 = arith.mulf %29, %34 : vector<32x32xf32>
    %c0_15 = arith.constant 0 : index
    %c0_16 = arith.constant 0 : index
    %36 = vector.load %arg5[%c0_15, %c0_16] : memref<32x224xf32, #tpu.memory_space<vmem>>, vector<32x224xf32>
    %c0_17 = arith.constant 0 : index
    %c0_18 = arith.constant 0 : index
    %37 = vector.load %arg6[%c0_17, %c0_18] : memref<32x224xf32, #tpu.memory_space<vmem>>, vector<32x224xf32>
    %38 = arith.subf %36, %37 : vector<32x224xf32>
    %39 = math.absf %38 : vector<32x224xf32>
    %cst_19 = arith.constant 1.000000e+00 : f32
    %40 = vector.broadcast %cst_19 : f32 to vector<32x224xf32>
    %41 = arith.cmpf olt, %39, %40 : vector<32x224xf32>
    %cst_20 = arith.constant 5.000000e-01 : f32
    %42 = vector.broadcast %cst_20 : f32 to vector<32x224xf32>
    %43 = arith.mulf %42, %39 : vector<32x224xf32>
    %44 = arith.mulf %43, %39 : vector<32x224xf32>
    %cst_21 = arith.constant 5.000000e-01 : f32
    %45 = vector.broadcast %cst_21 : f32 to vector<32x224xf32>
    %46 = arith.subf %39, %45 : vector<32x224xf32>
    %47 = arith.select %41, %44, %46 : vector<32x224xi1>, vector<32x224xf32>
    %c0_22 = arith.constant 0 : index
    %c0_23 = arith.constant 0 : index
    %48 = vector.load %arg7[%c0_22, %c0_23] : memref<224x32xbf16, #tpu.memory_space<vmem>>, vector<224x32xbf16>
    %49 = arith.extf %48 : vector<224x32xbf16> to vector<224x32xf32>
    %cst_24 = arith.constant dense<0.000000e+00> : vector<32x32xf32>
    %50 = tpu.matmul %47, %49, %cst_24 {dimension_numbers = #tpu.dot_dimension_numbers<[1], [0], [0], [1], [0, 0, 1, 1], [], []>} : vector<32x224xf32>, vector<224x32xf32>, vector<32x32xf32> -> vector<32x32xf32>
    %51 = arith.mulf %50, %4 : vector<32x32xf32>
    %c0_25 = arith.constant 0 : index
    %c0_26 = arith.constant 0 : index
    %52 = vector.load %arg8[%c0_25, %c0_26] : memref<8x32xf32, #tpu.memory_space<vmem>>, vector<8x32xf32>
    %53 = vector.shape_cast %27 : vector<32x32xf32> to vector<4x8x32xf32>
    %cst_27 = arith.constant dense<0.000000e+00> : vector<8x32xf32>
    %54 = vector.multi_reduction <add>, %53, %cst_27 [0] : vector<4x8x32xf32> to vector<8x32xf32>
    %55 = arith.addf %52, %54 : vector<8x32xf32>
    %c0_28 = arith.constant 0 : index
    %c0_29 = arith.constant 0 : index
    %56 = vector.load %arg8[%c0_28, %c0_29] : memref<8x32xf32, #tpu.memory_space<vmem>>, vector<8x32xf32>
    tpu.vector_store %arg8[%c0_28, %c0_29], %55 {strides = array<i32>} : memref<8x32xf32, #tpu.memory_space<vmem>>, vector<8x32xf32>,
    %c0_30 = arith.constant 0 : index
    %c0_31 = arith.constant 0 : index
    %57 = vector.load %arg9[%c0_30, %c0_31] : memref<8x32xf32, #tpu.memory_space<vmem>>, vector<8x32xf32>
    %58 = vector.shape_cast %35 : vector<32x32xf32> to vector<4x8x32xf32>
    %cst_32 = arith.constant dense<0.000000e+00> : vector<8x32xf32>
    %59 = vector.multi_reduction <add>, %58, %cst_32 [0] : vector<4x8x32xf32> to vector<8x32xf32>
    %60 = arith.addf %57, %59 : vector<8x32xf32>
    %c0_33 = arith.constant 0 : index
    %c0_34 = arith.constant 0 : index
    %61 = vector.load %arg9[%c0_33, %c0_34] : memref<8x32xf32, #tpu.memory_space<vmem>>, vector<8x32xf32>
    tpu.vector_store %arg9[%c0_33, %c0_34], %60 {strides = array<i32>} : memref<8x32xf32, #tpu.memory_space<vmem>>, vector<8x32xf32>,
    %c0_35 = arith.constant 0 : index
    %c0_36 = arith.constant 0 : index
    %62 = vector.load %arg10[%c0_35, %c0_36] : memref<8x32xf32, #tpu.memory_space<vmem>>, vector<8x32xf32>
    %63 = vector.shape_cast %4 : vector<32x32xf32> to vector<4x8x32xf32>
    %cst_37 = arith.constant dense<0.000000e+00> : vector<8x32xf32>
    %64 = vector.multi_reduction <add>, %63, %cst_37 [0] : vector<4x8x32xf32> to vector<8x32xf32>
    %65 = arith.addf %62, %64 : vector<8x32xf32>
    %c0_38 = arith.constant 0 : index
    %c0_39 = arith.constant 0 : index
    %66 = vector.load %arg10[%c0_38, %c0_39] : memref<8x32xf32, #tpu.memory_space<vmem>>, vector<8x32xf32>
    tpu.vector_store %arg10[%c0_38, %c0_39], %65 {strides = array<i32>} : memref<8x32xf32, #tpu.memory_space<vmem>>, vector<8x32xf32>,
    %c0_40 = arith.constant 0 : index
    %c0_41 = arith.constant 0 : index
    %67 = vector.load %arg11[%c0_40, %c0_41] : memref<8x32xf32, #tpu.memory_space<vmem>>, vector<8x32xf32>
    %68 = vector.shape_cast %6 : vector<32x32xf32> to vector<4x8x32xf32>
    %cst_42 = arith.constant dense<0.000000e+00> : vector<8x32xf32>
    %69 = vector.multi_reduction <add>, %68, %cst_42 [0] : vector<4x8x32xf32> to vector<8x32xf32>
    %70 = arith.addf %67, %69 : vector<8x32xf32>
    %c0_43 = arith.constant 0 : index
    %c0_44 = arith.constant 0 : index
    %71 = vector.load %arg11[%c0_43, %c0_44] : memref<8x32xf32, #tpu.memory_space<vmem>>, vector<8x32xf32>
    tpu.vector_store %arg11[%c0_43, %c0_44], %70 {strides = array<i32>} : memref<8x32xf32, #tpu.memory_space<vmem>>, vector<8x32xf32>,
    %c0_45 = arith.constant 0 : index
    %c0_46 = arith.constant 0 : index
    %72 = vector.load %arg12[%c0_45, %c0_46] : memref<8x32xf32, #tpu.memory_space<vmem>>, vector<8x32xf32>
    %73 = vector.shape_cast %51 : vector<32x32xf32> to vector<4x8x32xf32>
    %cst_47 = arith.constant dense<0.000000e+00> : vector<8x32xf32>
    %74 = vector.multi_reduction <add>, %73, %cst_47 [0] : vector<4x8x32xf32> to vector<8x32xf32>
    %75 = arith.addf %72, %74 : vector<8x32xf32>
    %c0_48 = arith.constant 0 : index
    %c0_49 = arith.constant 0 : index
    %76 = vector.load %arg12[%c0_48, %c0_49] : memref<8x32xf32, #tpu.memory_space<vmem>>, vector<8x32xf32>
    tpu.vector_store %arg12[%c0_48, %c0_49], %75 {strides = array<i32>} : memref<8x32xf32, #tpu.memory_space<vmem>>, vector<8x32xf32>,
    return
  }
  func.func @transform_0(%arg0: i32, %arg1: i32) -> (i32, i32) {
    %c1_i32 = arith.constant 1 : i32
    %0 = arith.muli %arg0, %c1_i32 : i32
    %1 = arith.addi %0, %arg1 : i32
    %c0_i32 = arith.constant 0 : i32
    %c0_i32_0 = arith.constant 0 : i32
    return %1, %c0_i32 : i32, i32
  }
  func.func @transform_1(%arg0: i32, %arg1: i32) -> (i32, i32) {
    %c1_i32 = arith.constant 1 : i32
    %0 = arith.muli %arg0, %c1_i32 : i32
    %1 = arith.addi %0, %arg1 : i32
    %c0_i32 = arith.constant 0 : i32
    %c0_i32_0 = arith.constant 0 : i32
    return %1, %c0_i32 : i32, i32
  }
  func.func @transform_2(%arg0: i32, %arg1: i32) -> (i32, i32) {
    %c1_i32 = arith.constant 1 : i32
    %0 = arith.muli %arg0, %c1_i32 : i32
    %1 = arith.addi %0, %arg1 : i32
    %c0_i32 = arith.constant 0 : i32
    %c0_i32_0 = arith.constant 0 : i32
    return %1, %c0_i32 : i32, i32
  }
  func.func @transform_3(%arg0: i32, %arg1: i32) -> (i32, i32) {
    %c1_i32 = arith.constant 1 : i32
    %0 = arith.muli %arg0, %c1_i32 : i32
    %1 = arith.addi %0, %arg1 : i32
    %c0_i32 = arith.constant 0 : i32
    %c0_i32_0 = arith.constant 0 : i32
    return %1, %c0_i32 : i32, i32
  }
  func.func @transform_4(%arg0: i32, %arg1: i32) -> (i32, i32) {
    %c1_i32 = arith.constant 1 : i32
    %0 = arith.muli %arg0, %c1_i32 : i32
    %1 = arith.addi %0, %arg1 : i32
    %c0_i32 = arith.constant 0 : i32
    %c0_i32_0 = arith.constant 0 : i32
    return %1, %c0_i32 : i32, i32
  }
  func.func @transform_5(%arg0: i32, %arg1: i32) -> (i32, i32) {
    %c0_i32 = arith.constant 0 : i32
    %c0_i32_0 = arith.constant 0 : i32
    %c0_i32_1 = arith.constant 0 : i32
    return %c0_i32, %c0_i32_0 : i32, i32
  }
  func.func @transform_6(%arg0: i32, %arg1: i32) -> (i32, i32) {
    %c0_i32 = arith.constant 0 : i32
    %c0_i32_0 = arith.constant 0 : i32
    return %arg0, %c0_i32 : i32, i32
  }
  func.func @transform_7(%arg0: i32, %arg1: i32) -> (i32, i32) {
    %c0_i32 = arith.constant 0 : i32
    %c0_i32_0 = arith.constant 0 : i32
    return %arg0, %c0_i32 : i32, i32
  }
  func.func @transform_8(%arg0: i32, %arg1: i32) -> (i32, i32) {
    %c0_i32 = arith.constant 0 : i32
    %c0_i32_0 = arith.constant 0 : i32
    return %arg0, %c0_i32 : i32, i32
  }
  func.func @transform_9(%arg0: i32, %arg1: i32) -> (i32, i32) {
    %c0_i32 = arith.constant 0 : i32
    %c0_i32_0 = arith.constant 0 : i32
    return %arg0, %c0_i32 : i32, i32
  }
  func.func @transform_10(%arg0: i32, %arg1: i32) -> (i32, i32) {
    %c0_i32 = arith.constant 0 : i32
    %c0_i32_0 = arith.constant 0 : i32
    return %arg0, %c0_i32 : i32, i32
  }
}

</mosaic_0001>

<llo_original>
// kernel: voxel_loss.1
$region0: #{voxel_loss.1}
  #allocation0 [shape = 'u32[]', space=smem, size = 0x4, offset = 0x4, fixed_abs, tag = 'smem constant byte address 0x4 - core index']
  #allocation1 [shape = 'u32[144,128]{1,0:T(1,128)}', space=vmem, size = 0x12000, scoped, tag = 'internal scratch']
  %s0 = inlined_call_operand.vmem [shape: f32[32,32], index: 0, kind: input, shape index: {}]
  %s1 = inlined_call_operand.vmem [shape: bf16[32,32], index: 1, kind: input, shape index: {}]
  %s2 = inlined_call_operand.vmem [shape: bf16[32,32], index: 2, kind: input, shape index: {}]
  %s3 = inlined_call_operand.vmem [shape: f32[32,224], index: 3, kind: input, shape index: {}]
  %s4 = inlined_call_operand.vmem [shape: f32[32,224], index: 4, kind: input, shape index: {}]
  %s5 = inlined_call_operand.vmem [shape: bf16[224,32], index: 5, kind: input, shape index: {}]
  %s6 = inlined_call_operand.vmem [shape: f32[8,32], index: 6, kind: output, shape index: {0}]
  %s7 = inlined_call_operand.vmem [shape: f32[8,32], index: 7, kind: output, shape index: {1}]
  %s8 = inlined_call_operand.vmem [shape: f32[8,32], index: 8, kind: output, shape index: {2}]
  %s9 = inlined_call_operand.vmem [shape: f32[8,32], index: 9, kind: output, shape index: {3}]
  %s10 = inlined_call_operand.vmem [shape: f32[8,32], index: 10, kind: output, shape index: {4}]
  %11 = xla_tuple %s6, %s7, %s8, %s9, %s10
  %s12 = sld [smem:[#allocation0]]
  $region70: #{voxel_loss.1} parent=0
    _
  %s14 = ssub.s32 1, %s12
  %s15 = scalar_select 0, %s14, %s12
  // Predicated region
  $region2: #{voxel_loss.1} parent=0 // pred_check
    _
  $region3: #{voxel_loss.1} parent=0 // pred_check_branch
    %17 = sbr.rel (0) target = $region5
  $region4: #{voxel_loss.1} parent=0 // pred_region
    %s18 = sadd.s32 0, 0
    %s19 = smul.u32 4, %s18
    %p20 = scmp.lt.s32.totalorder %s19, 3
    %s21 = scalar_select %p20, %s19, 3
    %s22 = smul.addr %s21, 8
    %s23 = scalar_lea.vmem %s0, %s22
    %s24 = sadd.s32 0, 0
    %s25 = smul.u32 4, %s24
  $region5: #{voxel_loss.1} parent=0 // pred_fallthru
    _
  // Predicated region
  $region6: #{voxel_loss.1} parent=0 // pred_check
    _
  $region7: #{voxel_loss.1} parent=0 // pred_check_branch
    %27 = sbr.rel (0) target = $region9
  $region8: #{voxel_loss.1} parent=0 // pred_region
    %s28 = sadd.s32 0, 0
    %s29 = smul.u32 4, %s28
    %p30 = scmp.lt.s32.totalorder %s29, 3
    %s31 = scalar_select %p30, %s29, 3
    %s32 = smul.addr %s31, 4
    %s33 = scalar_lea.vmem %s1, %s32
    %s34 = sadd.s32 0, 0
    %s35 = smul.u32 4, %s34
  $region9: #{voxel_loss.1} parent=0 // pred_fallthru
    _
  // Predicated region
  $region10: #{voxel_loss.1} parent=0 // pred_check
    _
  $region11: #{voxel_loss.1} parent=0 // pred_check_branch
    %37 = sbr.rel (0) target = $region13
  $region12: #{voxel_loss.1} parent=0 // pred_region
    %s38 = sadd.s32 0, 0
    %s39 = smul.u32 4, %s38
    %p40 = scmp.lt.s32.totalorder %s39, 3
    %s41 = scalar_select %p40, %s39, 3
    %s42 = smul.addr %s41, 4
    %s43 = scalar_lea.vmem %s2, %s42
    %s44 = sadd.s32 0, 0
    %s45 = smul.u32 4, %s44
  $region13: #{voxel_loss.1} parent=0 // pred_fallthru
    _
  // Predicated region
  $region14: #{voxel_loss.1} parent=0 // pred_check
    _
  $region15: #{voxel_loss.1} parent=0 // pred_check_branch
    %47 = sbr.rel (0) target = $region17
  $region16: #{voxel_loss.1} parent=0 // pred_region
    %s48 = sadd.s32 0, 0
    %s49 = smul.u32 4, %s48
    %p50 = scmp.lt.s32.totalorder %s49, 3
    %s51 = scalar_select %p50, %s49, 3
    %s52 = smul.addr %s51, 2
    %s53 = smul.addr %s52, 8
    %s54 = scalar_lea.vmem %s3, %s53
    %s55 = sadd.s32 0, 0
    %s56 = smul.u32 4, %s55
  $region17: #{voxel_loss.1} parent=0 // pred_fallthru
    _
  // Predicated region
  $region18: #{voxel_loss.1} parent=0 // pred_check
    _
  $region19: #{voxel_loss.1} parent=0 // pred_check_branch
    %58 = sbr.rel (0) target = $region21
  $region20: #{voxel_loss.1} parent=0 // pred_region
    %s59 = sadd.s32 0, 0
    %s60 = smul.u32 4, %s59
    %p61 = scmp.lt.s32.totalorder %s60, 3
    %s62 = scalar_select %p61, %s60, 3
    %s63 = smul.addr %s62, 2
    %s64 = smul.addr %s63, 8
    %s65 = scalar_lea.vmem %s4, %s64
    %s66 = sadd.s32 0, 0
    %s67 = smul.u32 4, %s66
  $region21: #{voxel_loss.1} parent=0 // pred_fallthru
    _
  // Predicated region
  $region22: #{voxel_loss.1} parent=0 // pred_check
    _
  $region23: #{voxel_loss.1} parent=0 // pred_check_branch
    %69 = sbr.rel (0) target = $region25
  $region24: #{voxel_loss.1} parent=0 // pred_region
    _
  $region25: #{voxel_loss.1} parent=0 // pred_fallthru
    _
  %s70 = sadd.s32 0, 0
  %s71 = smul.u32 4, %s70
  %p72 = scmp.lt.s32.totalorder %s71, 3
  %s73 = scalar_select %p72, %s71, 3
  %s74 = smul.addr %s73, 8
  %s75 = scalar_lea.vmem %s0, %s74
  %s76 = sadd.s32 0, 0
  %s77 = smul.u32 4, %s76
  %p78 = scmp.lt.s32.totalorder %s77, 3
  %s79 = scalar_select %p78, %s77, 3
  %s80 = smul.addr %s79, 4
  %s81 = scalar_lea.vmem %s1, %s80
  %s82 = sadd.s32 0, 0
  %s83 = smul.u32 4, %s82
  %p84 = scmp.lt.s32.totalorder %s83, 3
  %s85 = scalar_select %p84, %s83, 3
  %s86 = smul.addr %s85, 4
  %s87 = scalar_lea.vmem %s2, %s86
  %s88 = sadd.s32 0, 0
  %s89 = smul.u32 4, %s88
  %p90 = scmp.lt.s32.totalorder %s89, 3
  %s91 = scalar_select %p90, %s89, 3
  %s92 = smul.addr %s91, 2
  %s93 = smul.addr %s92, 8
  %s94 = scalar_lea.vmem %s3, %s93
  %s95 = sadd.s32 0, 0
  %s96 = smul.u32 4, %s95
  %p97 = scmp.lt.s32.totalorder %s96, 3
  %s98 = scalar_select %p97, %s96, 3
  %s99 = smul.addr %s98, 2
  %s100 = smul.addr %s99, 8
  %s101 = scalar_lea.vmem %s4, %s100
  %s102 = sadd.s32 0, 0
  %s103 = smul.u32 4, %s102
  %p104 = scmp.lt.s32.totalorder %s103, 3
  %s105 = scalar_select %p104, %s103, 3
  %s106 = smul.addr %s105, 8
  %s107 = scalar_lea.vmem %s0, %s106
  %s108 = sadd.s32 0, 0
  %s109 = smul.u32 4, %s108
  %s110 = sadd.s32 0, 0
  %s111 = smul.u32 4, %s110
  %p112 = scmp.lt.s32.totalorder %s111, 3
  %s113 = scalar_select %p112, %s111, 3
  %s114 = smul.addr %s113, 4
  %s115 = scalar_lea.vmem %s1, %s114
  %s116 = sadd.s32 0, 0
  %s117 = smul.u32 4, %s116
  %s118 = sadd.s32 0, 0
  %s119 = smul.u32 4, %s118
  %p120 = scmp.lt.s32.totalorder %s119, 3
  %s121 = scalar_select %p120, %s119, 3
  %s122 = smul.addr %s121, 4
  %s123 = scalar_lea.vmem %s2, %s122
  %s124 = sadd.s32 0, 0
  %s125 = smul.u32 4, %s124
  %s126 = sadd.s32 0, 0
  %s127 = smul.u32 4, %s126
  %p128 = scmp.lt.s32.totalorder %s127, 3
  %s129 = scalar_select %p128, %s127, 3
  %s130 = smul.addr %s129, 2
  %s131 = smul.addr %s130, 8
  %s132 = scalar_lea.vmem %s3, %s131
  %s133 = sadd.s32 0, 0
  %s134 = smul.u32 4, %s133
  %s135 = sadd.s32 0, 0
  %s136 = smul.u32 4, %s135
  %p137 = scmp.lt.s32.totalorder %s136, 3
  %s138 = scalar_select %p137, %s136, 3
  %s139 = smul.addr %s138, 2
  %s140 = smul.addr %s139, 8
  %s141 = scalar_lea.vmem %s4, %s140
  %s142 = sadd.s32 0, 0
  %s143 = smul.u32 4, %s142
  %p144 = scmp.eq.s32.totalorder 0, 0
  // Predicated region
  $region26: #{voxel_loss.1} parent=0 // pred_check
    %p145 = pneg %p144
  $region27: #{voxel_loss.1} parent=0 // pred_check_branch
    %147 = sbr.rel (%p145) target = $region29
  $region28: #{voxel_loss.1} parent=0 // pred_region
    %vm148 = vcmask 261120
    %149 = vst.msk [vmem:[%s6] sm:$0xff] %vm148, 0.0
    %150 = vst.msk [vmem:[%s7] sm:$0xff] %vm148, 0.0
    %151 = vst.msk [vmem:[%s8] sm:$0xff] %vm148, 0.0
    %152 = vst.msk [vmem:[%s9] sm:$0xff] %vm148, 0.0
    %153 = vst.msk [vmem:[%s10] sm:$0xff] %vm148, 0.0
  $region29: #{voxel_loss.1} parent=0 // pred_fallthru
    _
  %v154 = vld [vmem:[%s115] sm:$0xf]
  %v155 = vld [vmem:[%s115 + $0x4] sm:$0xf]
  %v156 = vld [vmem:[%s115 + $0x8] sm:$0xf]
  %v157 = vld [vmem:[%s115 + $0xc] sm:$0xf]
  %v158 = vunpack.c.l.bf16 %v154
  %v159 = vunpack.c.l.bf16 %v155
  %v160 = vunpack.c.l.bf16 %v156
  %v161 = vunpack.c.l.bf16 %v157
  %v162 = vld [vmem:[%s123] sm:$0xf]
  %v163 = vld [vmem:[%s123 + $0x4] sm:$0xf]
  %v164 = vld [vmem:[%s123 + $0x8] sm:$0xf]
  %v165 = vld [vmem:[%s123 + $0xc] sm:$0xf]
  %v166 = vunpack.c.l.bf16 %v162
  %v167 = vunpack.c.l.bf16 %v163
  %v168 = vunpack.c.l.bf16 %v164
  %v169 = vunpack.c.l.bf16 %v165
  %v170 = vld [vmem:[%s107] sm:$0xff]
  %v171 = vld [vmem:[%s107 + $0x8] sm:$0xff]
  %v172 = vld [vmem:[%s107 + $0x10] sm:$0xff]
  %v173 = vld [vmem:[%s107 + $0x18] sm:$0xff]
  %v174 = vmax.f32 %v170, -30.0
  %v175 = vmax.f32 %v171, -30.0
  %v176 = vmax.f32 %v172, -30.0
  %v177 = vmax.f32 %v173, -30.0
  %v178 = vmin.f32 %v174, 30.0
  %v179 = vmin.f32 %v175, 30.0
  %v180 = vmin.f32 %v176, 30.0
  %v181 = vmin.f32 %v177, 30.0
  %v182 = vsub.f32 0.0, %v178
  %v183 = vsub.f32 0.0, %v179
  %v184 = vsub.f32 0.0, %v180
  %v185 = vsub.f32 0.0, %v181
  %v186 = vmul.f32 %v182, 1.442695
  %v187 = vpow.pop %v186
  %v188 = vmul.f32 %v183, 1.442695
  %v189 = vpow.pop %v188
  %v190 = vmul.f32 %v184, 1.442695
  %v191 = vpow.pop %v190
  %v192 = vmul.f32 %v185, 1.442695
  %v193 = vpow.pop %v192
  %v194 = vadd.f32 %v187, 1.0
  %v195 = vadd.f32 %v189, 1.0
  %v196 = vadd.f32 %v191, 1.0
  %v197 = vadd.f32 %v193, 1.0
  %v198 = vrcp.pop %v194
  %v199 = vrcp.pop %v195
  %v200 = vrcp.pop %v196
  %v201 = vrcp.pop %v197
  %v202 = vmul.f32 %v194, %v198
  %v203 = vmul.f32 %v195, %v199
  %v204 = vmul.f32 %v196, %v200
  %v205 = vmul.f32 %v197, %v201
  %v206 = vsub.f32 2.0, %v202
  %v207 = vsub.f32 2.0, %v203
  %v208 = vsub.f32 2.0, %v204
  %v209 = vsub.f32 2.0, %v205
  %v210 = vmul.f32 %v198, %v206
  %v211 = vmul.f32 %v199, %v207
  %v212 = vmul.f32 %v200, %v208
  %v213 = vmul.f32 %v201, %v209
  %v214 = vsub.f32 0.0, %v158
  %v215 = vsub.f32 0.0, %v159
  %v216 = vsub.f32 0.0, %v160
  %v217 = vsub.f32 0.0, %v161
  %v218 = vadd.f32 %v210, 1e-06
  %v219 = vadd.f32 %v211, 1e-06
  %v220 = vadd.f32 %v212, 1e-06
  %v221 = vadd.f32 %v213, 1e-06
  %v222 = vlog2.pop %v218
  %v223 = vmul.f32 %v222, 0.6931472
  %v224 = vlog2.pop %v219
  %v225 = vmul.f32 %v224, 0.6931472
  %v226 = vlog2.pop %v220
  %v227 = vmul.f32 %v226, 0.6931472
  %v228 = vlog2.pop %v221
  %v229 = vmul.f32 %v228, 0.6931472
  %v230 = vmul.f32 %v214, %v223
  %v231 = vmul.f32 %v215, %v225
  %v232 = vmul.f32 %v216, %v227
  %v233 = vmul.f32 %v217, %v229
  %v234 = vsub.f32 0.0, %v166
  %v235 = vsub.f32 0.0, %v167
  %v236 = vsub.f32 0.0, %v168
  %v237 = vsub.f32 0.0, %v169
  %v238 = vsub.f32 1.0, %v210
  %v239 = vsub.f32 1.0, %v211
  %v240 = vsub.f32 1.0, %v212
  %v241 = vsub.f32 1.0, %v213
  %v242 = vadd.f32 %v238, 1e-06
  %v243 = vadd.f32 %v239, 1e-06
  %v244 = vadd.f32 %v240, 1e-06
  %v245 = vadd.f32 %v241, 1e-06
  %v246 = vlog2.pop %v242
  %v247 = vmul.f32 %v246, 0.6931472
  %v248 = vlog2.pop %v243
  %v249 = vmul.f32 %v248, 0.6931472
  %v250 = vlog2.pop %v244
  %v251 = vmul.f32 %v250, 0.6931472
  %v252 = vlog2.pop %v245
  %v253 = vmul.f32 %v252, 0.6931472
  %v254 = vmul.f32 %v234, %v247
  %v255 = vmul.f32 %v235, %v249
  %v256 = vmul.f32 %v236, %v251
  %v257 = vmul.f32 %v237, %v253
  %v258 = vld [vmem:[%s132] sm:$0xff]
  %v259 = vld [vmem:[%s132 + $0x8] sm:$0xff]
  %v260 = vld [vmem:[%s132 + $0x10] sm:$0xff]
  %v261 = vld [vmem:[%s132 + $0x18] sm:$0xff]
  %v262 = vld [vmem:[%s132 + $0x20] sm:$0xff]
  %v263 = vld [vmem:[%s132 + $0x28] sm:$0xff]
  %v264 = vld [vmem:[%s132 + $0x30] sm:$0xff]
  %v265 = vld [vmem:[%s132 + $0x38] sm:$0xff]
  %v266 = vld [vmem:[%s141] sm:$0xff]
  %v267 = vld [vmem:[%s141 + $0x8] sm:$0xff]
  %v268 = vld [vmem:[%s141 + $0x10] sm:$0xff]
  %v269 = vld [vmem:[%s141 + $0x18] sm:$0xff]
  %v270 = vld [vmem:[%s141 + $0x20] sm:$0xff]
  %v271 = vld [vmem:[%s141 + $0x28] sm:$0xff]
  %v272 = vld [vmem:[%s141 + $0x30] sm:$0xff]
  %v273 = vld [vmem:[%s141 + $0x38] sm:$0xff]
  %v274 = vsub.f32 %v258, %v266
  %v275 = vsub.f32 %v259, %v267
  %v276 = vsub.f32 %v260, %v268
  %v277 = vsub.f32 %v261, %v269
  %v278 = vsub.f32 %v262, %v270
  %v279 = vsub.f32 %v263, %v271
  %v280 = vsub.f32 %v264, %v272
  %v281 = vsub.f32 %v265, %v273
  %v282 = vand.u32 2147483647, %v274
  %v283 = vand.u32 2147483647, %v275
  %v284 = vand.u32 2147483647, %v276
  %v285 = vand.u32 2147483647, %v277
  %v286 = vand.u32 2147483647, %v278
  %v287 = vand.u32 2147483647, %v279
  %v288 = vand.u32 2147483647, %v280
  %v289 = vand.u32 2147483647, %v281
  %vm290 = vcmp.lt.f32.partialorder %v282, 1.0
  %vm291 = vcmp.lt.f32.partialorder %v283, 1.0
  %vm292 = vcmp.lt.f32.partialorder %v284, 1.0
  %vm293 = vcmp.lt.f32.partialorder %v285, 1.0
  %vm294 = vcmp.lt.f32.partialorder %v286, 1.0
  %vm295 = vcmp.lt.f32.partialorder %v287, 1.0
  %vm296 = vcmp.lt.f32.partialorder %v288, 1.0
  %vm297 = vcmp.lt.f32.partialorder %v289, 1.0
  %v298 = vmul.f32 %v282, 0.5
  %v299 = vmul.f32 %v283, 0.5
  %v300 = vmul.f32 %v284, 0.5
  %v301 = vmul.f32 %v285, 0.5
  %v302 = vmul.f32 %v286, 0.5
  %v303 = vmul.f32 %v287, 0.5
  %v304 = vmul.f32 %v288, 0.5
  %v305 = vmul.f32 %v289, 0.5
  %v306 = vmul.f32 %v298, %v282
  %v307 = vmul.f32 %v299, %v283
  %v308 = vmul.f32 %v300, %v284
  %v309 = vmul.f32 %v301, %v285
  %v310 = vmul.f32 %v302, %v286
  %v311 = vmul.f32 %v303, %v287
  %v312 = vmul.f32 %v304, %v288
  %v313 = vmul.f32 %v305, %v289
  %v314 = vsub.f32 %v282, 0.5
  %v315 = vsub.f32 %v283, 0.5
  %v316 = vsub.f32 %v284, 0.5
  %v317 = vsub.f32 %v285, 0.5
  %v318 = vsub.f32 %v286, 0.5
  %v319 = vsub.f32 %v287, 0.5
  %v320 = vsub.f32 %v288, 0.5
  %v321 = vsub.f32 %v289, 0.5
  %v322 = vsel %vm290, %v306, %v314
  %v323 = vsel %vm291, %v307, %v315
  %v324 = vsel %vm292, %v308, %v316
  %v325 = vsel %vm293, %v309, %v317
  %v326 = vsel %vm294, %v310, %v318
  %v327 = vsel %vm295, %v311, %v319
  %v328 = vsel %vm296, %v312, %v320
  %v329 = vsel %vm297, %v313, %v321
  %v330 = vld [vmem:[%s5] sm:$0xf]
  %v331 = vld [vmem:[%s5 + $0x4] sm:$0xf]
  %v332 = vld [vmem:[%s5 + $0x8] sm:$0xf]
  %v333 = vld [vmem:[%s5 + $0xc] sm:$0xf]
  %v334 = vld [vmem:[%s5 + $0x10] sm:$0xf]
  %v335 = vld [vmem:[%s5 + $0x14] sm:$0xf]
  %v336 = vld [vmem:[%s5 + $0x18] sm:$0xf]
  %v337 = vld [vmem:[%s5 + $0x1c] sm:$0xf]
  %v338 = vld [vmem:[%s5 + $0x20] sm:$0xf]
  %v339 = vld [vmem:[%s5 + $0x24] sm:$0xf]
  %v340 = vld [vmem:[%s5 + $0x28] sm:$0xf]
  %v341 = vld [vmem:[%s5 + $0x2c] sm:$0xf]
  %v342 = vld [vmem:[%s5 + $0x30] sm:$0xf]
  %v343 = vld [vmem:[%s5 + $0x34] sm:$0xf]
  %v344 = vld [vmem:[%s5 + $0x38] sm:$0xf]
  %v345 = vld [vmem:[%s5 + $0x3c] sm:$0xf]
  %v346 = vld [vmem:[%s5 + $0x40] sm:$0xf]
  %v347 = vld [vmem:[%s5 + $0x44] sm:$0xf]
  %v348 = vld [vmem:[%s5 + $0x48] sm:$0xf]
  %v349 = vld [vmem:[%s5 + $0x4c] sm:$0xf]
  %v350 = vld [vmem:[%s5 + $0x50] sm:$0xf]
  %v351 = vld [vmem:[%s5 + $0x54] sm:$0xf]
  %v352 = vld [vmem:[%s5 + $0x58] sm:$0xf]
  %v353 = vld [vmem:[%s5 + $0x5c] sm:$0xf]
  %v354 = vld [vmem:[%s5 + $0x60] sm:$0xf]
  %v355 = vld [vmem:[%s5 + $0x64] sm:$0xf]
  %v356 = vld [vmem:[%s5 + $0x68] sm:$0xf]
  %v357 = vld [vmem:[%s5 + $0x6c] sm:$0xf]
  %v358 = vunpack.c.l.bf16 %v330
  %v359 = vunpack.c.l.bf16 %v331
  %v360 = vunpack.c.l.bf16 %v332
  %v361 = vunpack.c.l.bf16 %v333
  %v362 = vunpack.c.l.bf16 %v334
  %v363 = vunpack.c.l.bf16 %v335
  %v364 = vunpack.c.l.bf16 %v336
  %v365 = vunpack.c.l.bf16 %v337
  %v366 = vunpack.c.l.bf16 %v338
  %v367 = vunpack.c.l.bf16 %v339
  %v368 = vunpack.c.l.bf16 %v340
  %v369 = vunpack.c.l.bf16 %v341
  %v370 = vunpack.c.l.bf16 %v342
  %v371 = vunpack.c.l.bf16 %v343
  %v372 = vunpack.c.l.bf16 %v344
  %v373 = vunpack.c.l.bf16 %v345
  %v374 = vunpack.c.l.bf16 %v346
  %v375 = vunpack.c.l.bf16 %v347
  %v376 = vunpack.c.l.bf16 %v348
  %v377 = vunpack.c.l.bf16 %v349
  %v378 = vunpack.c.l.bf16 %v350
  %v379 = vunpack.c.l.bf16 %v351
  %v380 = vunpack.c.l.bf16 %v352
  %v381 = vunpack.c.l.bf16 %v353
  %v382 = vunpack.c.l.bf16 %v354
  %v383 = vunpack.c.l.bf16 %v355
  %v384 = vunpack.c.l.bf16 %v356
  %v385 = vunpack.c.l.bf16 %v357
  %vm386 = vcmask 785408
  %v388 = vsel %vm386, %v323, 0
  %v391 = vsel %vm386, %v325, 0
  %v394 = vsel %vm386, %v327, 0
  %v397 = vsel %vm386, %v329, 0
  %399 = vmatprep.subr.mxu0 0.0
  %400 = vmatpush1.msra.mxu0 %v358
  %401 = vmatprep.subr.mxu0 0.0
  %402 = vmatpush1.msra.mxu0 %v359
  %403 = vmatprep.subr.mxu0 0.0
  %404 = vmatpush1.msra.mxu0 %v360
  %405 = vmatprep.subr.mxu0 0.0
  %406 = vmatpush1.msra.mxu0 %v361
  %407 = vmatprep.subr.mxu0 0.0
  %408 = vmatpush1.msra.mxu0 %v362
  %409 = vmatprep.subr.mxu0 0.0
  %410 = vmatpush1.msra.mxu0 %v363
  %411 = vmatprep.subr.mxu0 0.0
  %412 = vmatpush1.msra.mxu0 %v364
  %413 = vmatprep.subr.mxu0 0.0
  %414 = vmatpush1.msra.mxu0 %v365
  %415 = vmatprep.subr.mxu0 0.0
  %416 = vmatpush1.msra.mxu0 %v366
  %417 = vmatprep.subr.mxu0 0.0
  %418 = vmatpush1.msra.mxu0 %v367
  %419 = vmatprep.subr.mxu0 0.0
  %420 = vmatpush1.msra.mxu0 %v368
  %421 = vmatprep.subr.mxu0 0.0
  %422 = vmatpush1.msra.mxu0 %v369
  %423 = vmatprep.subr.mxu0 0.0
  %424 = vmatpush1.msra.mxu0 %v370
  %425 = vmatprep.subr.mxu0 0.0
  %426 = vmatpush1.msra.mxu0 %v371
  %427 = vmatprep.subr.mxu0 0.0
  %428 = vmatpush1.msra.mxu0 %v372
  %429 = vmatprep.subr.mxu0 0.0
  %430 = vmatpush1.msra.mxu0 %v373
  %431 = vmatprep.subr.mxu0 0.0
  %432 = vmatpush1.msra.mxu0 %v374
  %433 = vmatprep.subr.mxu0 0.0
  %434 = vmatpush1.msra.mxu0 %v375
  %435 = vmatprep.subr.mxu0 0.0
  %436 = vmatpush1.msra.mxu0 %v376
  %437 = vmatprep.subr.mxu0 0.0
  %438 = vmatpush1.msra.mxu0 %v377
  %439 = vmatprep.subr.mxu0 0.0
  %440 = vmatpush1.msra.mxu0 %v378
  %441 = vmatprep.subr.mxu0 0.0
  %442 = vmatpush1.msra.mxu0 %v379
  %443 = vmatprep.subr.mxu0 0.0
  %444 = vmatpush1.msra.mxu0 %v380
  %445 = vmatprep.subr.mxu0 0.0
  %446 = vmatpush1.msra.mxu0 %v381
  %447 = vmatprep.subr.mxu0 0.0
  %448 = vmatpush1.msra.mxu0 %v382
  %449 = vmatprep.subr.mxu0 0.0
  %450 = vmatpush1.msra.mxu0 %v383
  %451 = vmatprep.subr.mxu0 0.0
  %452 = vmatpush1.msra.mxu0 %v384
  %453 = vmatprep.subr.mxu0 0.0
  %454 = vmatpush1.msra.mxu0 %v385
  %455 = vmatprep.subr.mxu0 0.0
  %456 = vmatpush1.msra.mxu0 0.0
  %457 = vmatprep.subr.mxu0 0.0
  %458 = vmatpush1.msra.mxu0 0.0
  %459 = vmatprep.subr.mxu0 0.0
  %460 = vmatpush1.msra.mxu0 0.0
  %461 = vmatprep.subr.mxu0 0.0
  %462 = vmatpush1.msra.mxu0 0.0
  %463 = vmatprep.mubr.f32.mxu0 %v388
  %464 = vmatmul.mubr.f32.gmra.mrb[0].mxu0 %v322
  %v465 = vpop.f32.mrb[0].mxu0
  %v466 = vadd.f32 0.0, %v465
  %v467 = vpop.f32.mrb[0].mxu0
  %468 = vmatprep.mubr.f32.mxu0 %v391
  %469 = vmatmul.mubr.f32.gmra.mrb[0].mxu0 %v324
  %v470 = vpop.f32.mrb[0].mxu0
  %v471 = vadd.f32 0.0, %v470
  %v472 = vpop.f32.mrb[0].mxu0
  %473 = vmatprep.mubr.f32.mxu0 %v394
  %474 = vmatmul.mubr.f32.gmra.mrb[0].mxu0 %v326
  %v475 = vpop.f32.mrb[0].mxu0
  %v476 = vadd.f32 0.0, %v475
  %v477 = vpop.f32.mrb[0].mxu0
  %478 = vmatprep.mubr.f32.mxu0 %v397
  %479 = vmatmul.mubr.f32.gmra.mrb[0].mxu0 %v328
  %v480 = vpop.f32.mrb[0].mxu0
  %v481 = vadd.f32 0.0, %v480
  %v482 = vpop.f32.mrb[0].mxu0
  %483 = vdwg.mxu0
  %v484 = vmul.f32 %v466, %v158
  %v485 = vmul.f32 %v471, %v159
  %v486 = vmul.f32 %v476, %v160
  %v487 = vmul.f32 %v481, %v161
  %v488 = vld [vmem:[%s6] sm:$0xff]
  %vm489 = vcmask 261120
  %v490 = vsel %vm489, %v230, 0.0
  %v491 = vsel %vm489, %v231, 0.0
  %v492 = vadd.f32 %v490, %v491
  %v493 = vsel %vm489, %v232, 0.0
  %v494 = vadd.f32 %v492, %v493
  %v495 = vsel %vm489, %v233, 0.0
  %v496 = vadd.f32 %v494, %v495
  %v497 = vadd.f32 %v488, %v496
  %498 = vst.msk [vmem:[%s6] sm:$0xff] %vm489, %v497
  %v499 = vld [vmem:[%s7] sm:$0xff]
  %v500 = vsel %vm489, %v254, 0.0
  %v501 = vsel %vm489, %v255, 0.0
  %v502 = vadd.f32 %v500, %v501
  %v503 = vsel %vm489, %v256, 0.0
  %v504 = vadd.f32 %v502, %v503
  %v505 = vsel %vm489, %v257, 0.0
  %v506 = vadd.f32 %v504, %v505
  %v507 = vadd.f32 %v499, %v506
  %508 = vst.msk [vmem:[%s7] sm:$0xff] %vm489, %v507
  %v509 = vld [vmem:[%s8] sm:$0xff]
  %v510 = vsel %vm489, %v158, 0.0
  %v511 = vsel %vm489, %v159, 0.0
  %v512 = vadd.f32 %v510, %v511
  %v513 = vsel %vm489, %v160, 0.0
  %v514 = vadd.f32 %v512, %v513
  %v515 = vsel %vm489, %v161, 0.0
  %v516 = vadd.f32 %v514, %v515
  %v517 = vadd.f32 %v509, %v516
  %518 = vst.msk [vmem:[%s8] sm:$0xff] %vm489, %v517
  %v519 = vld [vmem:[%s9] sm:$0xff]
  %v520 = vsel %vm489, %v166, 0.0
  %v521 = vsel %vm489, %v167, 0.0
  %v522 = vadd.f32 %v520, %v521
  %v523 = vsel %vm489, %v168, 0.0
  %v524 = vadd.f32 %v522, %v523
  %v525 = vsel %vm489, %v169, 0.0
  %v526 = vadd.f32 %v524, %v525
  %v527 = vadd.f32 %v519, %v526
  %528 = vst.msk [vmem:[%s9] sm:$0xff] %vm489, %v527
  %v529 = vld [vmem:[%s10] sm:$0xff]
  %v530 = vsel %vm489, %v484, 0.0
  %v531 = vsel %vm489, %v485, 0.0
  %v532 = vadd.f32 %v530, %v531
  %v533 = vsel %vm489, %v486, 0.0
  %v534 = vadd.f32 %v532, %v533
  %v535 = vsel %vm489, %v487, 0.0
  %v536 = vadd.f32 %v534, %v535
  %v537 = vadd.f32 %v529, %v536
  %538 = vst.msk [vmem:[%s10] sm:$0xff] %vm489, %v537
  // Predicated region
  $region30: #{voxel_loss.1} parent=0 // pred_check
    _
  $region31: #{voxel_loss.1} parent=0 // pred_check_branch
    %540 = sbr.rel (0) target = $region33
  $region32: #{voxel_loss.1} parent=0 // pred_region
    _
  $region33: #{voxel_loss.1} parent=0 // pred_fallthru
    _
  // Predicated region
  $region34: #{voxel_loss.1} parent=0 // pred_check
    _
  $region35: #{voxel_loss.1} parent=0 // pred_check_branch
    %542 = sbr.rel (0) target = $region37
  $region36: #{voxel_loss.1} parent=0 // pred_region
    _
  $region37: #{voxel_loss.1} parent=0 // pred_fallthru
    _
  // Predicated region
  $region38: #{voxel_loss.1} parent=0 // pred_check
    _
  $region39: #{voxel_loss.1} parent=0 // pred_check_branch
    %544 = sbr.rel (0) target = $region41
  $region40: #{voxel_loss.1} parent=0 // pred_region
    _
  $region41: #{voxel_loss.1} parent=0 // pred_fallthru
    _
  // Predicated region
  $region42: #{voxel_loss.1} parent=0 // pred_check
    _
  $region43: #{voxel_loss.1} parent=0 // pred_check_branch
    %546 = sbr.rel (0) target = $region45
  $region44: #{voxel_loss.1} parent=0 // pred_region
    _
  $region45: #{voxel_loss.1} parent=0 // pred_fallthru
    _
  // Predicated region
  $region46: #{voxel_loss.1} parent=0 // pred_check
    _
  $region47: #{voxel_loss.1} parent=0 // pred_check_branch
    %548 = sbr.rel (0) target = $region49
  $region48: #{voxel_loss.1} parent=0 // pred_region
    _
  $region49: #{voxel_loss.1} parent=0 // pred_fallthru
    _
  // Predicated region
  $region50: #{voxel_loss.1} parent=0 // pred_check
    _
  $region51: #{voxel_loss.1} parent=0 // pred_check_branch
    %550 = sbr.rel (0) target = $region53
  $region52: #{voxel_loss.1} parent=0 // pred_region
    _
  $region53: #{voxel_loss.1} parent=0 // pred_fallthru
    _
  // Predicated region
  $region54: #{voxel_loss.1} parent=0 // pred_check
    _
  $region55: #{voxel_loss.1} parent=0 // pred_check_branch
    %552 = sbr.rel (0) target = $region57
  $region56: #{voxel_loss.1} parent=0 // pred_region
    _
  $region57: #{voxel_loss.1} parent=0 // pred_fallthru
    _
  // Predicated region
  $region58: #{voxel_loss.1} parent=0 // pred_check
    _
  $region59: #{voxel_loss.1} parent=0 // pred_check_branch
    %554 = sbr.rel (0) target = $region61
  $region60: #{voxel_loss.1} parent=0 // pred_region
    _
  $region61: #{voxel_loss.1} parent=0 // pred_fallthru
    _
  // Predicated region
  $region62: #{voxel_loss.1} parent=0 // pred_check
    _
  $region63: #{voxel_loss.1} parent=0 // pred_check_branch
    %556 = sbr.rel (0) target = $region65
  $region64: #{voxel_loss.1} parent=0 // pred_region
    _
  $region65: #{voxel_loss.1} parent=0 // pred_fallthru
    _
  // Predicated region
  $region66: #{voxel_loss.1} parent=0 // pred_check
    _
  $region67: #{voxel_loss.1} parent=0 // pred_check_branch
    %558 = sbr.rel (0) target = $region69
  $region68: #{voxel_loss.1} parent=0 // pred_region
    _
  $region69: #{voxel_loss.1} parent=0 // pred_fallthru
    _

</llo_original>
